<compile_context>
chip_gen: v7x
topology: tpu7x:2x2x1
jax: 0.10.0
libtpu: 0.0.40
codegen_flags: <defaults>
</compile_context>

<pallas_src>
import functools

import jax
import jax.numpy as jnp
from jax import lax
from jax.experimental import pallas as pl
from jax.experimental.pallas import tpu as pltpu


_LANES = 128
_SUBLANES = 8
_NEG_FILL = -1e9                      # sigmoid(_NEG_FILL) == 0.0 exactly in f32
_VMEM_INPUT_BUDGET = 4 * 1024 * 1024  # bytes of double-buffered input blocks
_CHUNK_TARGET_ROWS = 256              # rows reduced per inner fori_loop step


def _sigmoid_f32(x):
    # sigmoid(x) = 0.5 * (1 + tanh(x/2)): a single EUP tanh, no divides.
    return 0.5 * (1.0 + jnp.tanh(0.5 * x))


def _round_up(a, b):
    return (a + b - 1) // b * b


def _pick_chunk_rows(tile_rows):
    """Largest multiple of 8 <= _CHUNK_TARGET_ROWS that divides tile_rows."""
    if tile_rows <= _CHUNK_TARGET_ROWS:
        return tile_rows
    c = (_CHUNK_TARGET_ROWS // _SUBLANES) * _SUBLANES
    while tile_rows % c != 0:
        c -= _SUBLANES
    return c


def _make_dice_kernel(tile_rows, chunk_rows, rows_valid, need_row_mask):
    """Build the per-(channel, row-tile) kernel with static tiling params."""
    num_chunks = tile_rows // chunk_rows
    groups = chunk_rows // _SUBLANES

    def kernel(x_ref, t_ref, inter_ref, psum_ref, tsum_ref):
        k = pl.program_id(1)

        @pl.when(k == 0)
        def _():
            inter_ref[...] = jnp.zeros_like(inter_ref)
            psum_ref[...] = jnp.zeros_like(psum_ref)
            tsum_ref[...] = jnp.zeros_like(tsum_ref)

        tile_row0 = k * tile_rows

        def body(c, carry):
            acc_i, acc_p, acc_t = carry
            off = pl.multiple_of(c * chunk_rows, chunk_rows)
            x = x_ref[0, pl.ds(off, chunk_rows), :].astype(jnp.float32)
            t = t_ref[0, pl.ds(off, chunk_rows), :].astype(jnp.float32)
            p = _sigmoid_f32(x)                       # fused normalization (EUP)
            if need_row_mask:
                # Partial last row-tile: zero BOTH p and t so neither the
                # intersection nor the denominator sees garbage rows.
                rows = lax.broadcasted_iota(jnp.int32, (chunk_rows, _LANES), 0)
                valid = (tile_row0 + off + rows) < rows_valid
                p = jnp.where(valid, p, 0.0)
                t = jnp.where(valid, t, 0.0)
            # Lane-dense (8,128) vreg accumulation — pure VPU adds, no
            # cross-lane XLU reduce and no full-tile VMEM intermediates.
            acc_i = acc_i + jnp.sum((p * t).reshape(groups, _SUBLANES, _LANES), axis=0)
            acc_p = acc_p + jnp.sum(p.reshape(groups, _SUBLANES, _LANES), axis=0)
            acc_t = acc_t + jnp.sum(t.reshape(groups, _SUBLANES, _LANES), axis=0)
            return acc_i, acc_p, acc_t

        zeros = jnp.zeros((_SUBLANES, _LANES), jnp.float32)
        acc_i, acc_p, acc_t = lax.fori_loop(
            0, num_chunks, body, (zeros, zeros, zeros), unroll=True)

        inter_ref[...] += acc_i[None]
        psum_ref[...] += acc_p[None]
        tsum_ref[...] += acc_t[None]

    return kernel


def _dice_sums(x3d, t3d, tile_rows, chunk_rows, rows_valid, need_row_mask):
    """x3d, t3d: (C, R, 128). Returns three (C, 8, 128) partial sums:
    sum(p*t), sum(p), sum(t) per channel (lane-dense)."""
    c, r, lanes = x3d.shape
    assert lanes == _LANES
    grid = (c, pl.cdiv(r, tile_rows))
    kernel = _make_dice_kernel(tile_rows, chunk_rows, rows_valid, need_row_mask)

    in_spec = pl.BlockSpec((1, tile_rows, _LANES), lambda ci, ki: (ci, ki, 0))
    out_spec = pl.BlockSpec((1, _SUBLANES, _LANES), lambda ci, ki: (ci, 0, 0))
    out_shape = jax.ShapeDtypeStruct((c, _SUBLANES, _LANES), jnp.float32)

    elems = c * r * _LANES
    cost = pl.CostEstimate(
        flops=6 * elems,
        transcendentals=elems,
        bytes_accessed=elems * (x3d.dtype.itemsize + t3d.dtype.itemsize)
        + 3 * c * _SUBLANES * _LANES * 4,
    )

    return pl.pallas_call(
        kernel,
        out_shape=(out_shape, out_shape, out_shape),
        grid_spec=pltpu.PrefetchScalarGridSpec(
            num_scalar_prefetch=0,
            grid=grid,
            in_specs=[in_spec, in_spec],
            out_specs=[out_spec, out_spec, out_spec],
        ),
        compiler_params=pltpu.CompilerParams(
            dimension_semantics=("parallel", "arbitrary")),
        cost_estimate=cost,
    )(x3d, t3d)


@functools.partial(jax.jit, static_argnames=("epsilon", "block_rows"))
def dice_loss(logits, target, epsilon=1e-5, block_rows=None):
    """DiceLoss.forward with module defaults (sigmoid normalization)."""
    # TODO(synk): ignore_index masking, per-class weight, and the softmax
    # normalization path are not implemented (module defaults are used).
    assert logits.shape == target.shape, "'input' and 'target' must match"
    x0 = logits[0]
    t0 = target[0]
    total = x0.size
    assert total % 4 == 0, "input[0] must be reshapeable to [4, -1]"
    l = total // 4

    seg_logit = x0.reshape(4, l)
    seg_true = t0.reshape(4, l)

    # The spec drops column 0 ([:, 1:]); subtract its contribution afterwards.
    first_pred = _sigmoid_f32(seg_logit[:, 0].astype(jnp.float32))
    first_true = seg_true[:, 0].astype(jnp.float32)
    corr_inter = first_pred * first_true
    corr_denom = first_pred + first_true

    # --- lane-dense [C, rows, 128] layout ----------------------------------
    # Pad only up to the next multiple of 8*128 (free bitcast reshape when l
    # is already aligned — the common case).  Padded logits are -1e9
    # (sigmoid -> 0 exactly) and padded targets are 0: zero contribution.
    l_pad = _round_up(l, _SUBLANES * _LANES)
    if l_pad != l:
        # TODO(synk): for unaligned l this pad still costs one extra HBM pass;
        # it could be folded into the pallas_call via allow_input_fusion.
        seg_logit = jnp.pad(seg_logit, ((0, 0), (0, l_pad - l)),
                            constant_values=_NEG_FILL)
        seg_true = jnp.pad(seg_true, ((0, 0), (0, l_pad - l)))
    r = l_pad // _LANES                      # always a multiple of 8
    x3d = seg_logit.reshape(4, r, _LANES)
    t3d = seg_true.reshape(4, r, _LANES)

    # --- static tile sizing (VMEM-budgeted, dtype-packing aligned) ---------
    # 8 rows per packing granule for f32, 16 for bf16, 32 for int8/fp8.
    row_align = max(
        _SUBLANES * max(1, 4 // seg_logit.dtype.itemsize),
        _SUBLANES * max(1, 4 // seg_true.dtype.itemsize),
    )
    bytes_per_row = _LANES * (seg_logit.dtype.itemsize + seg_true.dtype.itemsize)
    max_rows = _VMEM_INPUT_BUDGET // (2 * bytes_per_row)   # 2 pipeline buffers
    if block_rows is not None:                              # test / tuning hook
        max_rows = min(max_rows, int(block_rows))
    max_rows = max(row_align, (max_rows // row_align) * row_align)
    tile_rows = min(max_rows, r)   # either full dim r, or a row_align multiple
    need_row_mask = (r % tile_rows) != 0
    chunk_rows = _pick_chunk_rows(tile_rows)

    inter_p, p_sum, t_sum = _dice_sums(
        x3d, t3d, tile_rows, chunk_rows, r, need_row_mask)

    intersect = jnp.sum(inter_p, axis=(1, 2)) - corr_inter               # [4]
    denominator = (jnp.sum(p_sum, axis=(1, 2)) + jnp.sum(t_sum, axis=(1, 2))
                   - corr_denom)                                         # [4]

    dice = 2.0 * intersect / jnp.maximum(denominator, jnp.float32(epsilon))
    return jnp.mean(1.0 - dice)


def _reference(logits, target, epsilon=1e-5):
    """Pure-JAX reference for a correctness sanity check."""
    x = logits.astype(jnp.float32)
    z = jnp.exp(-jnp.abs(x))
    pred = jnp.where(x >= 0, 1.0 / (1.0 + z), z / (1.0 + z))
    seg_pred = pred[0].reshape(4, -1)[:, 1:]
    seg_true = target[0].reshape(4, -1)[:, 1:].astype(jnp.float32)
    intersect = jnp.sum(seg_pred * seg_true, axis=-1)
    denominator = jnp.sum(seg_pred + seg_true, axis=-1)
    dice = 2.0 * intersect / jnp.maximum(denominator, epsilon)
    return jnp.mean(1.0 - dice)


if __name__ == "__main__":
    key = jax.random.PRNGKey(0)

    # (shape [N, C=4, D, H, W], logits dtype, forced max tile rows)
    cases = [
        ((2, 4, 8, 16, 16), jnp.float32, None),   # aligned: no pad, no mask
        ((2, 4, 5, 6, 7), jnp.bfloat16, None),    # unaligned: pad path, mixed dtype
        ((2, 4, 12, 16, 16), jnp.float32, 16),    # partial last row-tile: mask path
    ]

    for idx, (shape, x_dtype, block_rows) in enumerate(cases):
        k1, k2 = jax.random.split(jax.random.fold_in(key, idx))
        logits = jax.random.normal(k1, shape, jnp.float32).astype(x_dtype)
        target = (jax.random.uniform(k2, shape) > 0.5).astype(jnp.float32)

        loss = dice_loss(logits, target, block_rows=block_rows)
        jax.block_until_ready(loss)

        ref = _reference(logits, target)
        assert jnp.allclose(loss, ref, rtol=1e-4, atol=1e-5), (idx, loss, ref)

    print("KERNEL_OK")
</pallas_src>

<mosaic_0001>
module attributes {stable_mosaic.version = 11 : i64} {
  func.func @kernel(%arg0: i32, %arg1: i32, %arg2: memref<1x16x128xf32, #tpu.memory_space<vmem>>, %arg3: memref<1x16x128xf32, #tpu.memory_space<vmem>>, %arg4: memref<1x8x128xf32, #tpu.memory_space<vmem>>, %arg5: memref<1x8x128xf32, #tpu.memory_space<vmem>>, %arg6: memref<1x8x128xf32, #tpu.memory_space<vmem>>) attributes {dimension_semantics = [#tpu.dimension_semantics<parallel>, #tpu.dimension_semantics<arbitrary>], iteration_bounds = array<i64: 4, 1>, scalar_prefetch = 0 : i64, scratch_operands = 0 : i64, tpu.core_type = #tpu.core_type<tc>, window_params = [{transform_indices = @transform_0, window_bounds = array<i64: 1, 16, 128>}, {transform_indices = @transform_1, window_bounds = array<i64: 1, 16, 128>}, {transform_indices = @transform_2, window_bounds = array<i64: 1, 8, 128>}, {transform_indices = @transform_3, window_bounds = array<i64: 1, 8, 128>}, {transform_indices = @transform_4, window_bounds = array<i64: 1, 8, 128>}]} {
    %c0_i32 = arith.constant 0 : i32
    %0 = arith.cmpi eq, %arg1, %c0_i32 : i32
    %1 = arith.extui %0 : i1 to i32
    %c0_i32_0 = arith.constant 0 : i32
    %2 = arith.cmpi ne, %1, %c0_i32_0 : i32
    scf.if %2 {
      %cst_29 = arith.constant 0.000000e+00 : f32
      %41 = vector.broadcast %cst_29 : f32 to vector<1x8x128xf32>
      %c0_30 = arith.constant 0 : index
      %c0_31 = arith.constant 0 : index
      %c0_32 = arith.constant 0 : index
      %42 = vector.load %arg4[%c0_30, %c0_31, %c0_32] : memref<1x8x128xf32, #tpu.memory_space<vmem>>, vector<1x8x128xf32>
      tpu.vector_store %arg4[%c0_30, %c0_31, %c0_32], %41 {strides = array<i32>} : memref<1x8x128xf32, #tpu.memory_space<vmem>>, vector<1x8x128xf32>,
      %cst_33 = arith.constant 0.000000e+00 : f32
      %43 = vector.broadcast %cst_33 : f32 to vector<1x8x128xf32>
      %c0_34 = arith.constant 0 : index
      %c0_35 = arith.constant 0 : index
      %c0_36 = arith.constant 0 : index
      %44 = vector.load %arg5[%c0_34, %c0_35, %c0_36] : memref<1x8x128xf32, #tpu.memory_space<vmem>>, vector<1x8x128xf32>
      tpu.vector_store %arg5[%c0_34, %c0_35, %c0_36], %43 {strides = array<i32>} : memref<1x8x128xf32, #tpu.memory_space<vmem>>, vector<1x8x128xf32>,
      %cst_37 = arith.constant 0.000000e+00 : f32
      %45 = vector.broadcast %cst_37 : f32 to vector<1x8x128xf32>
      %c0_38 = arith.constant 0 : index
      %c0_39 = arith.constant 0 : index
      %c0_40 = arith.constant 0 : index
      %46 = vector.load %arg6[%c0_38, %c0_39, %c0_40] : memref<1x8x128xf32, #tpu.memory_space<vmem>>, vector<1x8x128xf32>
      tpu.vector_store %arg6[%c0_38, %c0_39, %c0_40], %45 {strides = array<i32>} : memref<1x8x128xf32, #tpu.memory_space<vmem>>, vector<1x8x128xf32>,
    } else {
    }
    %cst = arith.constant 0.000000e+00 : f32
    %3 = vector.broadcast %cst : f32 to vector<8x128xf32>
    %c0_i32_1 = arith.constant 0 : i32
    %c16_i32 = arith.constant 16 : i32
    %4 = arith.muli %c0_i32_1, %c16_i32 : i32
    %5 = tpu.assume_multiple %4, 16 : i32
    %c0 = arith.constant 0 : index
    %6 = arith.index_cast %5 : i32 to index
    %c0_2 = arith.constant 0 : index
    %7 = vector.load %arg2[%c0, %6, %c0_2] : memref<1x16x128xf32, #tpu.memory_space<vmem>>, vector<1x16x128xf32>
    %8 = vector.shape_cast %7 : vector<1x16x128xf32> to vector<16x128xf32>
    %c0_3 = arith.constant 0 : index
    %9 = arith.index_cast %5 : i32 to index
    %c0_4 = arith.constant 0 : index
    %10 = vector.load %arg3[%c0_3, %9, %c0_4] : memref<1x16x128xf32, #tpu.memory_space<vmem>>, vector<1x16x128xf32>
    %11 = vector.shape_cast %10 : vector<1x16x128xf32> to vector<16x128xf32>
    %cst_5 = arith.constant 5.000000e-01 : f32
    %12 = vector.broadcast %cst_5 : f32 to vector<16x128xf32>
    %13 = arith.mulf %12, %8 : vector<16x128xf32>
    %14 = math.tanh %13 : vector<16x128xf32>
    %cst_6 = arith.constant 1.000000e+00 : f32
    %15 = vector.broadcast %cst_6 : f32 to vector<16x128xf32>
    %16 = arith.addf %15, %14 : vector<16x128xf32>
    %cst_7 = arith.constant 5.000000e-01 : f32
    %17 = vector.broadcast %cst_7 : f32 to vector<16x128xf32>
    %18 = arith.mulf %17, %16 : vector<16x128xf32>
    %19 = arith.mulf %18, %11 : vector<16x128xf32>
    %20 = vector.shape_cast %19 : vector<16x128xf32> to vector<2x8x128xf32>
    %cst_8 = arith.constant dense<0.000000e+00> : vector<8x128xf32>
    %21 = vector.multi_reduction <add>, %20, %cst_8 [0] : vector<2x8x128xf32> to vector<8x128xf32>
    %22 = arith.addf %3, %21 : vector<8x128xf32>
    %23 = vector.shape_cast %18 : vector<16x128xf32> to vector<2x8x128xf32>
    %cst_9 = arith.constant dense<0.000000e+00> : vector<8x128xf32>
    %24 = vector.multi_reduction <add>, %23, %cst_9 [0] : vector<2x8x128xf32> to vector<8x128xf32>
    %25 = arith.addf %3, %24 : vector<8x128xf32>
    %26 = vector.shape_cast %11 : vector<16x128xf32> to vector<2x8x128xf32>
    %cst_10 = arith.constant dense<0.000000e+00> : vector<8x128xf32>
    %27 = vector.multi_reduction <add>, %26, %cst_10 [0] : vector<2x8x128xf32> to vector<8x128xf32>
    %28 = arith.addf %3, %27 : vector<8x128xf32>
    %c1_i32 = arith.constant 1 : i32
    %c0_11 = arith.constant 0 : index
    %c0_12 = arith.constant 0 : index
    %c0_13 = arith.constant 0 : index
    %29 = vector.load %arg4[%c0_11, %c0_12, %c0_13] : memref<1x8x128xf32, #tpu.memory_space<vmem>>, vector<1x8x128xf32>
    %30 = vector.shape_cast %22 : vector<8x128xf32> to vector<1x8x128xf32>
    %31 = arith.addf %29, %30 : vector<1x8x128xf32>
    %c0_14 = arith.constant 0 : index
    %c0_15 = arith.constant 0 : index
    %c0_16 = arith.constant 0 : index
    %32 = vector.load %arg4[%c0_14, %c0_15, %c0_16] : memref<1x8x128xf32, #tpu.memory_space<vmem>>, vector<1x8x128xf32>
    tpu.vector_store %arg4[%c0_14, %c0_15, %c0_16], %31 {strides = array<i32>} : memref<1x8x128xf32, #tpu.memory_space<vmem>>, vector<1x8x128xf32>,
    %c0_17 = arith.constant 0 : index
    %c0_18 = arith.constant 0 : index
    %c0_19 = arith.constant 0 : index
    %33 = vector.load %arg5[%c0_17, %c0_18, %c0_19] : memref<1x8x128xf32, #tpu.memory_space<vmem>>, vector<1x8x128xf32>
    %34 = vector.shape_cast %25 : vector<8x128xf32> to vector<1x8x128xf32>
    %35 = arith.addf %33, %34 : vector<1x8x128xf32>
    %c0_20 = arith.constant 0 : index
    %c0_21 = arith.constant 0 : index
    %c0_22 = arith.constant 0 : index
    %36 = vector.load %arg5[%c0_20, %c0_21, %c0_22] : memref<1x8x128xf32, #tpu.memory_space<vmem>>, vector<1x8x128xf32>
    tpu.vector_store %arg5[%c0_20, %c0_21, %c0_22], %35 {strides = array<i32>} : memref<1x8x128xf32, #tpu.memory_space<vmem>>, vector<1x8x128xf32>,
    %c0_23 = arith.constant 0 : index
    %c0_24 = arith.constant 0 : index
    %c0_25 = arith.constant 0 : index
    %37 = vector.load %arg6[%c0_23, %c0_24, %c0_25] : memref<1x8x128xf32, #tpu.memory_space<vmem>>, vector<1x8x128xf32>
    %38 = vector.shape_cast %28 : vector<8x128xf32> to vector<1x8x128xf32>
    %39 = arith.addf %37, %38 : vector<1x8x128xf32>
    %c0_26 = arith.constant 0 : index
    %c0_27 = arith.constant 0 : index
    %c0_28 = arith.constant 0 : index
    %40 = vector.load %arg6[%c0_26, %c0_27, %c0_28] : memref<1x8x128xf32, #tpu.memory_space<vmem>>, vector<1x8x128xf32>
    tpu.vector_store %arg6[%c0_26, %c0_27, %c0_28], %39 {strides = array<i32>} : memref<1x8x128xf32, #tpu.memory_space<vmem>>, vector<1x8x128xf32>,
    return
  }
  func.func @transform_0(%arg0: i32, %arg1: i32) -> (i32, i32, i32) {
    %c0_i32 = arith.constant 0 : i32
    %c0_i32_0 = arith.constant 0 : i32
    return %arg0, %arg1, %c0_i32 : i32, i32, i32
  }
  func.func @transform_1(%arg0: i32, %arg1: i32) -> (i32, i32, i32) {
    %c0_i32 = arith.constant 0 : i32
    %c0_i32_0 = arith.constant 0 : i32
    return %arg0, %arg1, %c0_i32 : i32, i32, i32
  }
  func.func @transform_2(%arg0: i32, %arg1: i32) -> (i32, i32, i32) {
    %c0_i32 = arith.constant 0 : i32
    %c0_i32_0 = arith.constant 0 : i32
    %c0_i32_1 = arith.constant 0 : i32
    return %arg0, %c0_i32, %c0_i32_0 : i32, i32, i32
  }
  func.func @transform_3(%arg0: i32, %arg1: i32) -> (i32, i32, i32) {
    %c0_i32 = arith.constant 0 : i32
    %c0_i32_0 = arith.constant 0 : i32
    %c0_i32_1 = arith.constant 0 : i32
    return %arg0, %c0_i32, %c0_i32_0 : i32, i32, i32
  }
  func.func @transform_4(%arg0: i32, %arg1: i32) -> (i32, i32, i32) {
    %c0_i32 = arith.constant 0 : i32
    %c0_i32_0 = arith.constant 0 : i32
    %c0_i32_1 = arith.constant 0 : i32
    return %arg0, %c0_i32, %c0_i32_0 : i32, i32, i32
  }
}

</mosaic_0001>

<llo_original>
// kernel: squeeze.10
$region0: #{squeeze.10}
  %s0 = inlined_call_operand.vmem [shape: f32[1,4,8,16,16], index: 0, kind: input, shape index: {}]
  %s1 = inlined_call_operand.vmem [shape: f32[4,16,128], index: 1, kind: output, shape index: {}]
  %v2 = vld [vmem:[%s0] ss:$8 sm:$0xf]
  %v3 = vld [vmem:[%s0] ss:$8 sm:$0xf0]
  %vm4 = vcmask 1047556
  %v5 = vsel %vm4, %v3, %v2
  %vm6 = vcmask 130048
  %7 = vst.msk [vmem:[%s1] sm:$0xff] %vm6, %v5
  %s8 = scalar_lea.vmem %s0, 64
  %v9 = vld [vmem:[%s8] ss:$8 sm:$0xf]
  %s10 = scalar_lea.vmem %s0, 64
  %v11 = vld [vmem:[%s10] ss:$8 sm:$0xf0]
  %vm12 = vcmask 1047556
  %v13 = vsel %vm12, %v11, %v9
  %vm14 = vcmask 130048
  %s15 = scalar_lea.vmem %s1, 8
  %16 = vst.msk [vmem:[%s15] sm:$0xff] %vm14, %v13
  %s17 = scalar_lea.vmem %s0, 128
  %v18 = vld [vmem:[%s17] ss:$8 sm:$0xf]
  %s19 = scalar_lea.vmem %s0, 128
  %v20 = vld [vmem:[%s19] ss:$8 sm:$0xf0]
  %vm21 = vcmask 1047556
  %v22 = vsel %vm21, %v20, %v18
  %vm23 = vcmask 130048
  %s24 = scalar_lea.vmem %s1, 16
  %25 = vst.msk [vmem:[%s24] sm:$0xff] %vm23, %v22
  %s26 = scalar_lea.vmem %s0, 192
  %v27 = vld [vmem:[%s26] ss:$8 sm:$0xf]
  %s28 = scalar_lea.vmem %s0, 192
  %v29 = vld [vmem:[%s28] ss:$8 sm:$0xf0]
  %vm30 = vcmask 1047556
  %v31 = vsel %vm30, %v29, %v27
  %vm32 = vcmask 130048
  %s33 = scalar_lea.vmem %s1, 24
  %34 = vst.msk [vmem:[%s33] sm:$0xff] %vm32, %v31
  %s35 = scalar_lea.vmem %s0, 256
  %v36 = vld [vmem:[%s35] ss:$8 sm:$0xf]
  %s37 = scalar_lea.vmem %s0, 256
  %v38 = vld [vmem:[%s37] ss:$8 sm:$0xf0]
  %vm39 = vcmask 1047556
  %v40 = vsel %vm39, %v38, %v36
  %vm41 = vcmask 130048
  %s42 = scalar_lea.vmem %s1, 32
  %43 = vst.msk [vmem:[%s42] sm:$0xff] %vm41, %v40
  %s44 = scalar_lea.vmem %s0, 320
  %v45 = vld [vmem:[%s44] ss:$8 sm:$0xf]
  %s46 = scalar_lea.vmem %s0, 320
  %v47 = vld [vmem:[%s46] ss:$8 sm:$0xf0]
  %vm48 = vcmask 1047556
  %v49 = vsel %vm48, %v47, %v45
  %vm50 = vcmask 130048
  %s51 = scalar_lea.vmem %s1, 40
  %52 = vst.msk [vmem:[%s51] sm:$0xff] %vm50, %v49
  %s53 = scalar_lea.vmem %s0, 384
  %v54 = vld [vmem:[%s53] ss:$8 sm:$0xf]
  %s55 = scalar_lea.vmem %s0, 384
  %v56 = vld [vmem:[%s55] ss:$8 sm:$0xf0]
  %vm57 = vcmask 1047556
  %v58 = vsel %vm57, %v56, %v54
  %vm59 = vcmask 130048
  %s60 = scalar_lea.vmem %s1, 48
  %61 = vst.msk [vmem:[%s60] sm:$0xff] %vm59, %v58
  %s62 = scalar_lea.vmem %s0, 448
  %v63 = vld [vmem:[%s62] ss:$8 sm:$0xf]
  %s64 = scalar_lea.vmem %s0, 448
  %v65 = vld [vmem:[%s64] ss:$8 sm:$0xf0]
  %vm66 = vcmask 1047556
  %v67 = vsel %vm66, %v65, %v63
  %vm68 = vcmask 130048
  %s69 = scalar_lea.vmem %s1, 56
  %70 = vst.msk [vmem:[%s69] sm:$0xff] %vm68, %v67
  %s71 = scalar_lea.vmem %s0, 7
  %v72 = vld [vmem:[%s71] ss:$8 sm:$0xf]
  %s73 = scalar_lea.vmem %s0, 7
  %v74 = vld [vmem:[%s73] ss:$8 sm:$0xf0]
  %vm75 = vcmask 1047556
  %v76 = vsel %vm75, %v74, %v72
  %77 = vrot.lane.b32.xlu0 %v76, 112
  %v78 = vpop.permute.xlu0 %77
  %vm79 = vcmask 1048448
  %80 = vst.msk [vmem:[%s1] sm:$0xff] %vm79, %v78
  %s81 = scalar_lea.vmem %s0, 263
  %v82 = vld [vmem:[%s81] ss:$8 sm:$0xf]
  %s83 = scalar_lea.vmem %s0, 263
  %v84 = vld [vmem:[%s83] ss:$8 sm:$0xf0]
  %vm85 = vcmask 1047556
  %v86 = vsel %vm85, %v84, %v82
  %87 = vrot.lane.b32.xlu0 %v86, 112
  %v88 = vpop.permute.xlu0 %87
  %vm89 = vcmask 1048448
  %s90 = scalar_lea.vmem %s1, 32
  %91 = vst.msk [vmem:[%s90] sm:$0xff] %vm89, %v88
  %s92 = scalar_lea.vmem %s0, 71
  %v93 = vld [vmem:[%s92] ss:$8 sm:$0xf]
  %s94 = scalar_lea.vmem %s0, 71
  %v95 = vld [vmem:[%s94] ss:$8 sm:$0xf0]
  %vm96 = vcmask 1047556
  %v97 = vsel %vm96, %v95, %v93
  %98 = vrot.lane.b32.xlu0 %v97, 112
  %v99 = vpop.permute.xlu0 %98
  %vm100 = vcmask 1048448
  %s101 = scalar_lea.vmem %s1, 8
  %102 = vst.msk [vmem:[%s101] sm:$0xff] %vm100, %v99
  %s103 = scalar_lea.vmem %s0, 327
  %v104 = vld [vmem:[%s103] ss:$8 sm:$0xf]
  %s105 = scalar_lea.vmem %s0, 327
  %v106 = vld [vmem:[%s105] ss:$8 sm:$0xf0]
  %vm107 = vcmask 1047556
  %v108 = vsel %vm107, %v106, %v104
  %109 = vrot.lane.b32.xlu0 %v108, 112
  %v110 = vpop.permute.xlu0 %109
  %vm111 = vcmask 1048448
  %s112 = scalar_lea.vmem %s1, 40
  %113 = vst.msk [vmem:[%s112] sm:$0xff] %vm111, %v110
  %s114 = scalar_lea.vmem %s0, 135
  %v115 = vld [vmem:[%s114] ss:$8 sm:$0xf]
  %s116 = scalar_lea.vmem %s0, 135
  %v117 = vld [vmem:[%s116] ss:$8 sm:$0xf0]
  %vm118 = vcmask 1047556
  %v119 = vsel %vm118, %v117, %v115
  %120 = vrot.lane.b32.xlu0 %v119, 112
  %v121 = vpop.permute.xlu0 %120
  %vm122 = vcmask 1048448
  %s123 = scalar_lea.vmem %s1, 16
  %124 = vst.msk [vmem:[%s123] sm:$0xff] %vm122, %v121
  %s125 = scalar_lea.vmem %s0, 391
  %v126 = vld [vmem:[%s125] ss:$8 sm:$0xf]
  %s127 = scalar_lea.vmem %s0, 391
  %v128 = vld [vmem:[%s127] ss:$8 sm:$0xf0]
  %vm129 = vcmask 1047556
  %v130 = vsel %vm129, %v128, %v126
  %131 = vrot.lane.b32.xlu0 %v130, 112
  %v132 = vpop.permute.xlu0 %131
  %vm133 = vcmask 1048448
  %s134 = scalar_lea.vmem %s1, 48
  %135 = vst.msk [vmem:[%s134] sm:$0xff] %vm133, %v132
  %s136 = scalar_lea.vmem %s0, 199
  %v137 = vld [vmem:[%s136] ss:$8 sm:$0xf]
  %s138 = scalar_lea.vmem %s0, 199
  %v139 = vld [vmem:[%s138] ss:$8 sm:$0xf0]
  %vm140 = vcmask 1047556
  %v141 = vsel %vm140, %v139, %v137
  %142 = vrot.lane.b32.xlu0 %v141, 112
  %v143 = vpop.permute.xlu0 %142
  %vm144 = vcmask 1048448
  %s145 = scalar_lea.vmem %s1, 24
  %146 = vst.msk [vmem:[%s145] sm:$0xff] %vm144, %v143
  %s147 = scalar_lea.vmem %s0, 455
  %v148 = vld [vmem:[%s147] ss:$8 sm:$0xf]
  %s149 = scalar_lea.vmem %s0, 455
  %v150 = vld [vmem:[%s149] ss:$8 sm:$0xf0]
  %vm151 = vcmask 1047556
  %v152 = vsel %vm151, %v150, %v148
  %153 = vrot.lane.b32.xlu0 %v152, 112
  %v154 = vpop.permute.xlu0 %153
  %vm155 = vcmask 1048448
  %s156 = scalar_lea.vmem %s1, 56
  %157 = vst.msk [vmem:[%s156] sm:$0xff] %vm155, %v154
  %s158 = scalar_lea.vmem %s0, 6
  %v159 = vld [vmem:[%s158] ss:$8 sm:$0xf]
  %s160 = scalar_lea.vmem %s0, 6
  %v161 = vld [vmem:[%s160] ss:$8 sm:$0xf0]
  %vm162 = vcmask 1047556
  %v163 = vsel %vm162, %v161, %v159
  %164 = vrot.lane.b32.xlu0 %v163, 96
  %v165 = vpop.permute.xlu0 %164
  %vm166 = vcmask 917248
  %167 = vst.msk [vmem:[%s1] sm:$0xff] %vm166, %v165
  %s168 = scalar_lea.vmem %s0, 262
  %v169 = vld [vmem:[%s168] ss:$8 sm:$0xf]
  %s170 = scalar_lea.vmem %s0, 262
  %v171 = vld [vmem:[%s170] ss:$8 sm:$0xf0]
  %vm172 = vcmask 1047556
  %v173 = vsel %vm172, %v171, %v169
  %174 = vrot.lane.b32.xlu0 %v173, 96
  %v175 = vpop.permute.xlu0 %174
  %vm176 = vcmask 917248
  %s177 = scalar_lea.vmem %s1, 32
  %178 = vst.msk [vmem:[%s177] sm:$0xff] %vm176, %v175
  %s179 = scalar_lea.vmem %s0, 70
  %v180 = vld [vmem:[%s179] ss:$8 sm:$0xf]
  %s181 = scalar_lea.vmem %s0, 70
  %v182 = vld [vmem:[%s181] ss:$8 sm:$0xf0]
  %vm183 = vcmask 1047556
  %v184 = vsel %vm183, %v182, %v180
  %185 = vrot.lane.b32.xlu0 %v184, 96
  %v186 = vpop.permute.xlu0 %185
  %vm187 = vcmask 917248
  %s188 = scalar_lea.vmem %s1, 8
  %189 = vst.msk [vmem:[%s188] sm:$0xff] %vm187, %v186
  %s190 = scalar_lea.vmem %s0, 326
  %v191 = vld [vmem:[%s190] ss:$8 sm:$0xf]
  %s192 = scalar_lea.vmem %s0, 326
  %v193 = vld [vmem:[%s192] ss:$8 sm:$0xf0]
  %vm194 = vcmask 1047556
  %v195 = vsel %vm194, %v193, %v191
  %196 = vrot.lane.b32.xlu0 %v195, 96
  %v197 = vpop.permute.xlu0 %196
  %vm198 = vcmask 917248
  %s199 = scalar_lea.vmem %s1, 40
  %200 = vst.msk [vmem:[%s199] sm:$0xff] %vm198, %v197
  %s201 = scalar_lea.vmem %s0, 134
  %v202 = vld [vmem:[%s201] ss:$8 sm:$0xf]
  %s203 = scalar_lea.vmem %s0, 134
  %v204 = vld [vmem:[%s203] ss:$8 sm:$0xf0]
  %vm205 = vcmask 1047556
  %v206 = vsel %vm205, %v204, %v202
  %207 = vrot.lane.b32.xlu0 %v206, 96
  %v208 = vpop.permute.xlu0 %207
  %vm209 = vcmask 917248
  %s210 = scalar_lea.vmem %s1, 16
  %211 = vst.msk [vmem:[%s210] sm:$0xff] %vm209, %v208
  %s212 = scalar_lea.vmem %s0, 390
  %v213 = vld [vmem:[%s212] ss:$8 sm:$0xf]
  %s214 = scalar_lea.vmem %s0, 390
  %v215 = vld [vmem:[%s214] ss:$8 sm:$0xf0]
  %vm216 = vcmask 1047556
  %v217 = vsel %vm216, %v215, %v213
  %218 = vrot.lane.b32.xlu0 %v217, 96
  %v219 = vpop.permute.xlu0 %218
  %vm220 = vcmask 917248
  %s221 = scalar_lea.vmem %s1, 48
  %222 = vst.msk [vmem:[%s221] sm:$0xff] %vm220, %v219
  %s223 = scalar_lea.vmem %s0, 198
  %v224 = vld [vmem:[%s223] ss:$8 sm:$0xf]
  %s225 = scalar_lea.vmem %s0, 198
  %v226 = vld [vmem:[%s225] ss:$8 sm:$0xf0]
  %vm227 = vcmask 1047556
  %v228 = vsel %vm227, %v226, %v224
  %229 = vrot.lane.b32.xlu0 %v228, 96
  %v230 = vpop.permute.xlu0 %229
  %vm231 = vcmask 917248
  %s232 = scalar_lea.vmem %s1, 24
  %233 = vst.msk [vmem:[%s232] sm:$0xff] %vm231, %v230
  %s234 = scalar_lea.vmem %s0, 454
  %v235 = vld [vmem:[%s234] ss:$8 sm:$0xf]
  %s236 = scalar_lea.vmem %s0, 454
  %v237 = vld [vmem:[%s236] ss:$8 sm:$0xf0]
  %vm238 = vcmask 1047556
  %v239 = vsel %vm238, %v237, %v235
  %240 = vrot.lane.b32.xlu0 %v239, 96
  %v241 = vpop.permute.xlu0 %240
  %vm242 = vcmask 917248
  %s243 = scalar_lea.vmem %s1, 56
  %244 = vst.msk [vmem:[%s243] sm:$0xff] %vm242, %v241
  %s245 = scalar_lea.vmem %s0, 5
  %v246 = vld [vmem:[%s245] ss:$8 sm:$0xf]
  %s247 = scalar_lea.vmem %s0, 5
  %v248 = vld [vmem:[%s247] ss:$8 sm:$0xf0]
  %vm249 = vcmask 1047556
  %v250 = vsel %vm249, %v248, %v246
  %251 = vrot.lane.b32.xlu0 %v250, 80
  %v252 = vpop.permute.xlu0 %251
  %vm253 = vcmask 786048
  %254 = vst.msk [vmem:[%s1] sm:$0xff] %vm253, %v252
  %s255 = scalar_lea.vmem %s0, 261
  %v256 = vld [vmem:[%s255] ss:$8 sm:$0xf]
  %s257 = scalar_lea.vmem %s0, 261
  %v258 = vld [vmem:[%s257] ss:$8 sm:$0xf0]
  %vm259 = vcmask 1047556
  %v260 = vsel %vm259, %v258, %v256
  %261 = vrot.lane.b32.xlu0 %v260, 80
  %v262 = vpop.permute.xlu0 %261
  %vm263 = vcmask 786048
  %s264 = scalar_lea.vmem %s1, 32
  %265 = vst.msk [vmem:[%s264] sm:$0xff] %vm263, %v262
  %s266 = scalar_lea.vmem %s0, 69
  %v267 = vld [vmem:[%s266] ss:$8 sm:$0xf]
  %s268 = scalar_lea.vmem %s0, 69
  %v269 = vld [vmem:[%s268] ss:$8 sm:$0xf0]
  %vm270 = vcmask 1047556
  %v271 = vsel %vm270, %v269, %v267
  %272 = vrot.lane.b32.xlu0 %v271, 80
  %v273 = vpop.permute.xlu0 %272
  %vm274 = vcmask 786048
  %s275 = scalar_lea.vmem %s1, 8
  %276 = vst.msk [vmem:[%s275] sm:$0xff] %vm274, %v273
  %s277 = scalar_lea.vmem %s0, 325
  %v278 = vld [vmem:[%s277] ss:$8 sm:$0xf]
  %s279 = scalar_lea.vmem %s0, 325
  %v280 = vld [vmem:[%s279] ss:$8 sm:$0xf0]
  %vm281 = vcmask 1047556
  %v282 = vsel %vm281, %v280, %v278
  %283 = vrot.lane.b32.xlu0 %v282, 80
  %v284 = vpop.permute.xlu0 %283
  %vm285 = vcmask 786048
  %s286 = scalar_lea.vmem %s1, 40
  %287 = vst.msk [vmem:[%s286] sm:$0xff] %vm285, %v284
  %s288 = scalar_lea.vmem %s0, 133
  %v289 = vld [vmem:[%s288] ss:$8 sm:$0xf]
  %s290 = scalar_lea.vmem %s0, 133
  %v291 = vld [vmem:[%s290] ss:$8 sm:$0xf0]
  %vm292 = vcmask 1047556
  %v293 = vsel %vm292, %v291, %v289
  %294 = vrot.lane.b32.xlu0 %v293, 80
  %v295 = vpop.permute.xlu0 %294
  %vm296 = vcmask 786048
  %s297 = scalar_lea.vmem %s1, 16
  %298 = vst.msk [vmem:[%s297] sm:$0xff] %vm296, %v295
  %s299 = scalar_lea.vmem %s0, 389
  %v300 = vld [vmem:[%s299] ss:$8 sm:$0xf]
  %s301 = scalar_lea.vmem %s0, 389
  %v302 = vld [vmem:[%s301] ss:$8 sm:$0xf0]
  %vm303 = vcmask 1047556
  %v304 = vsel %vm303, %v302, %v300
  %305 = vrot.lane.b32.xlu0 %v304, 80
  %v306 = vpop.permute.xlu0 %305
  %vm307 = vcmask 786048
  %s308 = scalar_lea.vmem %s1, 48
  %309 = vst.msk [vmem:[%s308] sm:$0xff] %vm307, %v306
  %s310 = scalar_lea.vmem %s0, 197
  %v311 = vld [vmem:[%s310] ss:$8 sm:$0xf]
  %s312 = scalar_lea.vmem %s0, 197
  %v313 = vld [vmem:[%s312] ss:$8 sm:$0xf0]
  %vm314 = vcmask 1047556
  %v315 = vsel %vm314, %v313, %v311
  %316 = vrot.lane.b32.xlu0 %v315, 80
  %v317 = vpop.permute.xlu0 %316
  %vm318 = vcmask 786048
  %s319 = scalar_lea.vmem %s1, 24
  %320 = vst.msk [vmem:[%s319] sm:$0xff] %vm318, %v317
  %s321 = scalar_lea.vmem %s0, 453
  %v322 = vld [vmem:[%s321] ss:$8 sm:$0xf]
  %s323 = scalar_lea.vmem %s0, 453
  %v324 = vld [vmem:[%s323] ss:$8 sm:$0xf0]
  %vm325 = vcmask 1047556
  %v326 = vsel %vm325, %v324, %v322
  %327 = vrot.lane.b32.xlu0 %v326, 80
  %v328 = vpop.permute.xlu0 %327
  %vm329 = vcmask 786048
  %s330 = scalar_lea.vmem %s1, 56
  %331 = vst.msk [vmem:[%s330] sm:$0xff] %vm329, %v328
  %s332 = scalar_lea.vmem %s0, 4
  %v333 = vld [vmem:[%s332] ss:$8 sm:$0xf]
  %s334 = scalar_lea.vmem %s0, 4
  %v335 = vld [vmem:[%s334] ss:$8 sm:$0xf0]
  %vm336 = vcmask 1047556
  %v337 = vsel %vm336, %v335, %v333
  %338 = vrot.lane.b32.xlu0 %v337, 64
  %v339 = vpop.permute.xlu0 %338
  %vm340 = vcmask 654848
  %341 = vst.msk [vmem:[%s1] sm:$0xff] %vm340, %v339
  %s342 = scalar_lea.vmem %s0, 260
  %v343 = vld [vmem:[%s342] ss:$8 sm:$0xf]
  %s344 = scalar_lea.vmem %s0, 260
  %v345 = vld [vmem:[%s344] ss:$8 sm:$0xf0]
  %vm346 = vcmask 1047556
  %v347 = vsel %vm346, %v345, %v343
  %348 = vrot.lane.b32.xlu0 %v347, 64
  %v349 = vpop.permute.xlu0 %348
  %vm350 = vcmask 654848
  %s351 = scalar_lea.vmem %s1, 32
  %352 = vst.msk [vmem:[%s351] sm:$0xff] %vm350, %v349
  %s353 = scalar_lea.vmem %s0, 68
  %v354 = vld [vmem:[%s353] ss:$8 sm:$0xf]
  %s355 = scalar_lea.vmem %s0, 68
  %v356 = vld [vmem:[%s355] ss:$8 sm:$0xf0]
  %vm357 = vcmask 1047556
  %v358 = vsel %vm357, %v356, %v354
  %359 = vrot.lane.b32.xlu0 %v358, 64
  %v360 = vpop.permute.xlu0 %359
  %vm361 = vcmask 654848
  %s362 = scalar_lea.vmem %s1, 8
  %363 = vst.msk [vmem:[%s362] sm:$0xff] %vm361, %v360
  %s364 = scalar_lea.vmem %s0, 324
  %v365 = vld [vmem:[%s364] ss:$8 sm:$0xf]
  %s366 = scalar_lea.vmem %s0, 324
  %v367 = vld [vmem:[%s366] ss:$8 sm:$0xf0]
  %vm368 = vcmask 1047556
  %v369 = vsel %vm368, %v367, %v365
  %370 = vrot.lane.b32.xlu0 %v369, 64
  %v371 = vpop.permute.xlu0 %370
  %vm372 = vcmask 654848
  %s373 = scalar_lea.vmem %s1, 40
  %374 = vst.msk [vmem:[%s373] sm:$0xff] %vm372, %v371
  %s375 = scalar_lea.vmem %s0, 132
  %v376 = vld [vmem:[%s375] ss:$8 sm:$0xf]
  %s377 = scalar_lea.vmem %s0, 132
  %v378 = vld [vmem:[%s377] ss:$8 sm:$0xf0]
  %vm379 = vcmask 1047556
  %v380 = vsel %vm379, %v378, %v376
  %381 = vrot.lane.b32.xlu0 %v380, 64
  %v382 = vpop.permute.xlu0 %381
  %vm383 = vcmask 654848
  %s384 = scalar_lea.vmem %s1, 16
  %385 = vst.msk [vmem:[%s384] sm:$0xff] %vm383, %v382
  %s386 = scalar_lea.vmem %s0, 388
  %v387 = vld [vmem:[%s386] ss:$8 sm:$0xf]
  %s388 = scalar_lea.vmem %s0, 388
  %v389 = vld [vmem:[%s388] ss:$8 sm:$0xf0]
  %vm390 = vcmask 1047556
  %v391 = vsel %vm390, %v389, %v387
  %392 = vrot.lane.b32.xlu0 %v391, 64
  %v393 = vpop.permute.xlu0 %392
  %vm394 = vcmask 654848
  %s395 = scalar_lea.vmem %s1, 48
  %396 = vst.msk [vmem:[%s395] sm:$0xff] %vm394, %v393
  %s397 = scalar_lea.vmem %s0, 196
  %v398 = vld [vmem:[%s397] ss:$8 sm:$0xf]
  %s399 = scalar_lea.vmem %s0, 196
  %v400 = vld [vmem:[%s399] ss:$8 sm:$0xf0]
  %vm401 = vcmask 1047556
  %v402 = vsel %vm401, %v400, %v398
  %403 = vrot.lane.b32.xlu0 %v402, 64
  %v404 = vpop.permute.xlu0 %403
  %vm405 = vcmask 654848
  %s406 = scalar_lea.vmem %s1, 24
  %407 = vst.msk [vmem:[%s406] sm:$0xff] %vm405, %v404
  %s408 = scalar_lea.vmem %s0, 452
  %v409 = vld [vmem:[%s408] ss:$8 sm:$0xf]
  %s410 = scalar_lea.vmem %s0, 452
  %v411 = vld [vmem:[%s410] ss:$8 sm:$0xf0]
  %vm412 = vcmask 1047556
  %v413 = vsel %vm412, %v411, %v409
  %414 = vrot.lane.b32.xlu0 %v413, 64
  %v415 = vpop.permute.xlu0 %414
  %vm416 = vcmask 654848
  %s417 = scalar_lea.vmem %s1, 56
  %418 = vst.msk [vmem:[%s417] sm:$0xff] %vm416, %v415
  %s419 = scalar_lea.vmem %s0, 3
  %v420 = vld [vmem:[%s419] ss:$8 sm:$0xf]
  %s421 = scalar_lea.vmem %s0, 3
  %v422 = vld [vmem:[%s421] ss:$8 sm:$0xf0]
  %vm423 = vcmask 1047556
  %v424 = vsel %vm423, %v422, %v420
  %425 = vrot.lane.b32.xlu0 %v424, 48
  %v426 = vpop.permute.xlu0 %425
  %vm427 = vcmask 523648
  %428 = vst.msk [vmem:[%s1] sm:$0xff] %vm427, %v426
  %s429 = scalar_lea.vmem %s0, 259
  %v430 = vld [vmem:[%s429] ss:$8 sm:$0xf]
  %s431 = scalar_lea.vmem %s0, 259
  %v432 = vld [vmem:[%s431] ss:$8 sm:$0xf0]
  %vm433 = vcmask 1047556
  %v434 = vsel %vm433, %v432, %v430
  %435 = vrot.lane.b32.xlu0 %v434, 48
  %v436 = vpop.permute.xlu0 %435
  %vm437 = vcmask 523648
  %s438 = scalar_lea.vmem %s1, 32
  %439 = vst.msk [vmem:[%s438] sm:$0xff] %vm437, %v436
  %s440 = scalar_lea.vmem %s0, 67
  %v441 = vld [vmem:[%s440] ss:$8 sm:$0xf]
  %s442 = scalar_lea.vmem %s0, 67
  %v443 = vld [vmem:[%s442] ss:$8 sm:$0xf0]
  %vm444 = vcmask 1047556
  %v445 = vsel %vm444, %v443, %v441
  %446 = vrot.lane.b32.xlu0 %v445, 48
  %v447 = vpop.permute.xlu0 %446
  %vm448 = vcmask 523648
  %s449 = scalar_lea.vmem %s1, 8
  %450 = vst.msk [vmem:[%s449] sm:$0xff] %vm448, %v447
  %s451 = scalar_lea.vmem %s0, 323
  %v452 = vld [vmem:[%s451] ss:$8 sm:$0xf]
  %s453 = scalar_lea.vmem %s0, 323
  %v454 = vld [vmem:[%s453] ss:$8 sm:$0xf0]
  %vm455 = vcmask 1047556
  %v456 = vsel %vm455, %v454, %v452
  %457 = vrot.lane.b32.xlu0 %v456, 48
  %v458 = vpop.permute.xlu0 %457
  %vm459 = vcmask 523648
  %s460 = scalar_lea.vmem %s1, 40
  %461 = vst.msk [vmem:[%s460] sm:$0xff] %vm459, %v458
  %s462 = scalar_lea.vmem %s0, 131
  %v463 = vld [vmem:[%s462] ss:$8 sm:$0xf]
  %s464 = scalar_lea.vmem %s0, 131
  %v465 = vld [vmem:[%s464] ss:$8 sm:$0xf0]
  %vm466 = vcmask 1047556
  %v467 = vsel %vm466, %v465, %v463
  %468 = vrot.lane.b32.xlu0 %v467, 48
  %v469 = vpop.permute.xlu0 %468
  %vm470 = vcmask 523648
  %s471 = scalar_lea.vmem %s1, 16
  %472 = vst.msk [vmem:[%s471] sm:$0xff] %vm470, %v469
  %s473 = scalar_lea.vmem %s0, 387
  %v474 = vld [vmem:[%s473] ss:$8 sm:$0xf]
  %s475 = scalar_lea.vmem %s0, 387
  %v476 = vld [vmem:[%s475] ss:$8 sm:$0xf0]
  %vm477 = vcmask 1047556
  %v478 = vsel %vm477, %v476, %v474
  %479 = vrot.lane.b32.xlu0 %v478, 48
  %v480 = vpop.permute.xlu0 %479
  %vm481 = vcmask 523648
  %s482 = scalar_lea.vmem %s1, 48
  %483 = vst.msk [vmem:[%s482] sm:$0xff] %vm481, %v480
  %s484 = scalar_lea.vmem %s0, 195
  %v485 = vld [vmem:[%s484] ss:$8 sm:$0xf]
  %s486 = scalar_lea.vmem %s0, 195
  %v487 = vld [vmem:[%s486] ss:$8 sm:$0xf0]
  %vm488 = vcmask 1047556
  %v489 = vsel %vm488, %v487, %v485
  %490 = vrot.lane.b32.xlu0 %v489, 48
  %v491 = vpop.permute.xlu0 %490
  %vm492 = vcmask 523648
  %s493 = scalar_lea.vmem %s1, 24
  %494 = vst.msk [vmem:[%s493] sm:$0xff] %vm492, %v491
  %s495 = scalar_lea.vmem %s0, 451
  %v496 = vld [vmem:[%s495] ss:$8 sm:$0xf]
  %s497 = scalar_lea.vmem %s0, 451
  %v498 = vld [vmem:[%s497] ss:$8 sm:$0xf0]
  %vm499 = vcmask 1047556
  %v500 = vsel %vm499, %v498, %v496
  %501 = vrot.lane.b32.xlu0 %v500, 48
  %v502 = vpop.permute.xlu0 %501
  %vm503 = vcmask 523648
  %s504 = scalar_lea.vmem %s1, 56
  %505 = vst.msk [vmem:[%s504] sm:$0xff] %vm503, %v502
  %s506 = scalar_lea.vmem %s0, 2
  %v507 = vld [vmem:[%s506] ss:$8 sm:$0xf]
  %s508 = scalar_lea.vmem %s0, 2
  %v509 = vld [vmem:[%s508] ss:$8 sm:$0xf0]
  %vm510 = vcmask 1047556
  %v511 = vsel %vm510, %v509, %v507
  %512 = vrot.lane.b32.xlu0 %v511, 32
  %v513 = vpop.permute.xlu0 %512
  %vm514 = vcmask 392448
  %515 = vst.msk [vmem:[%s1] sm:$0xff] %vm514, %v513
  %s516 = scalar_lea.vmem %s0, 258
  %v517 = vld [vmem:[%s516] ss:$8 sm:$0xf]
  %s518 = scalar_lea.vmem %s0, 258
  %v519 = vld [vmem:[%s518] ss:$8 sm:$0xf0]
  %vm520 = vcmask 1047556
  %v521 = vsel %vm520, %v519, %v517
  %522 = vrot.lane.b32.xlu0 %v521, 32
  %v523 = vpop.permute.xlu0 %522
  %vm524 = vcmask 392448
  %s525 = scalar_lea.vmem %s1, 32
  %526 = vst.msk [vmem:[%s525] sm:$0xff] %vm524, %v523
  %s527 = scalar_lea.vmem %s0, 66
  %v528 = vld [vmem:[%s527] ss:$8 sm:$0xf]
  %s529 = scalar_lea.vmem %s0, 66
  %v530 = vld [vmem:[%s529] ss:$8 sm:$0xf0]
  %vm531 = vcmask 1047556
  %v532 = vsel %vm531, %v530, %v528
  %533 = vrot.lane.b32.xlu0 %v532, 32
  %v534 = vpop.permute.xlu0 %533
  %vm535 = vcmask 392448
  %s536 = scalar_lea.vmem %s1, 8
  %537 = vst.msk [vmem:[%s536] sm:$0xff] %vm535, %v534
  %s538 = scalar_lea.vmem %s0, 322
  %v539 = vld [vmem:[%s538] ss:$8 sm:$0xf]
  %s540 = scalar_lea.vmem %s0, 322
  %v541 = vld [vmem:[%s540] ss:$8 sm:$0xf0]
  %vm542 = vcmask 1047556
  %v543 = vsel %vm542, %v541, %v539
  %544 = vrot.lane.b32.xlu0 %v543, 32
  %v545 = vpop.permute.xlu0 %544
  %vm546 = vcmask 392448
  %s547 = scalar_lea.vmem %s1, 40
  %548 = vst.msk [vmem:[%s547] sm:$0xff] %vm546, %v545
  %s549 = scalar_lea.vmem %s0, 130
  %v550 = vld [vmem:[%s549] ss:$8 sm:$0xf]
  %s551 = scalar_lea.vmem %s0, 130
  %v552 = vld [vmem:[%s551] ss:$8 sm:$0xf0]
  %vm553 = vcmask 1047556
  %v554 = vsel %vm553, %v552, %v550
  %555 = vrot.lane.b32.xlu0 %v554, 32
  %v556 = vpop.permute.xlu0 %555
  %vm557 = vcmask 392448
  %s558 = scalar_lea.vmem %s1, 16
  %559 = vst.msk [vmem:[%s558] sm:$0xff] %vm557, %v556
  %s560 = scalar_lea.vmem %s0, 386
  %v561 = vld [vmem:[%s560] ss:$8 sm:$0xf]
  %s562 = scalar_lea.vmem %s0, 386
  %v563 = vld [vmem:[%s562] ss:$8 sm:$0xf0]
  %vm564 = vcmask 1047556
  %v565 = vsel %vm564, %v563, %v561
  %566 = vrot.lane.b32.xlu0 %v565, 32
  %v567 = vpop.permute.xlu0 %566
  %vm568 = vcmask 392448
  %s569 = scalar_lea.vmem %s1, 48
  %570 = vst.msk [vmem:[%s569] sm:$0xff] %vm568, %v567
  %s571 = scalar_lea.vmem %s0, 194
  %v572 = vld [vmem:[%s571] ss:$8 sm:$0xf]
  %s573 = scalar_lea.vmem %s0, 194
  %v574 = vld [vmem:[%s573] ss:$8 sm:$0xf0]
  %vm575 = vcmask 1047556
  %v576 = vsel %vm575, %v574, %v572
  %577 = vrot.lane.b32.xlu0 %v576, 32
  %v578 = vpop.permute.xlu0 %577
  %vm579 = vcmask 392448
  %s580 = scalar_lea.vmem %s1, 24
  %581 = vst.msk [vmem:[%s580] sm:$0xff] %vm579, %v578
  %s582 = scalar_lea.vmem %s0, 450
  %v583 = vld [vmem:[%s582] ss:$8 sm:$0xf]
  %s584 = scalar_lea.vmem %s0, 450
  %v585 = vld [vmem:[%s584] ss:$8 sm:$0xf0]
  %vm586 = vcmask 1047556
  %v587 = vsel %vm586, %v585, %v583
  %588 = vrot.lane.b32.xlu0 %v587, 32
  %v589 = vpop.permute.xlu0 %588
  %vm590 = vcmask 392448
  %s591 = scalar_lea.vmem %s1, 56
  %592 = vst.msk [vmem:[%s591] sm:$0xff] %vm590, %v589
  %s593 = scalar_lea.vmem %s0, 1
  %v594 = vld [vmem:[%s593] ss:$8 sm:$0xf]
  %s595 = scalar_lea.vmem %s0, 1
  %v596 = vld [vmem:[%s595] ss:$8 sm:$0xf0]
  %vm597 = vcmask 1047556
  %v598 = vsel %vm597, %v596, %v594
  %599 = vrot.lane.b32.xlu0 %v598, 16
  %v600 = vpop.permute.xlu0 %599
  %vm601 = vcmask 261248
  %602 = vst.msk [vmem:[%s1] sm:$0xff] %vm601, %v600
  %s603 = scalar_lea.vmem %s0, 257
  %v604 = vld [vmem:[%s603] ss:$8 sm:$0xf]
  %s605 = scalar_lea.vmem %s0, 257
  %v606 = vld [vmem:[%s605] ss:$8 sm:$0xf0]
  %vm607 = vcmask 1047556
  %v608 = vsel %vm607, %v606, %v604
  %609 = vrot.lane.b32.xlu0 %v608, 16
  %v610 = vpop.permute.xlu0 %609
  %vm611 = vcmask 261248
  %s612 = scalar_lea.vmem %s1, 32
  %613 = vst.msk [vmem:[%s612] sm:$0xff] %vm611, %v610
  %s614 = scalar_lea.vmem %s0, 65
  %v615 = vld [vmem:[%s614] ss:$8 sm:$0xf]
  %s616 = scalar_lea.vmem %s0, 65
  %v617 = vld [vmem:[%s616] ss:$8 sm:$0xf0]
  %vm618 = vcmask 1047556
  %v619 = vsel %vm618, %v617, %v615
  %620 = vrot.lane.b32.xlu0 %v619, 16
  %v621 = vpop.permute.xlu0 %620
  %vm622 = vcmask 261248
  %s623 = scalar_lea.vmem %s1, 8
  %624 = vst.msk [vmem:[%s623] sm:$0xff] %vm622, %v621
  %s625 = scalar_lea.vmem %s0, 321
  %v626 = vld [vmem:[%s625] ss:$8 sm:$0xf]
  %s627 = scalar_lea.vmem %s0, 321
  %v628 = vld [vmem:[%s627] ss:$8 sm:$0xf0]
  %vm629 = vcmask 1047556
  %v630 = vsel %vm629, %v628, %v626
  %631 = vrot.lane.b32.xlu0 %v630, 16
  %v632 = vpop.permute.xlu0 %631
  %vm633 = vcmask 261248
  %s634 = scalar_lea.vmem %s1, 40
  %635 = vst.msk [vmem:[%s634] sm:$0xff] %vm633, %v632
  %s636 = scalar_lea.vmem %s0, 129
  %v637 = vld [vmem:[%s636] ss:$8 sm:$0xf]
  %s638 = scalar_lea.vmem %s0, 129
  %v639 = vld [vmem:[%s638] ss:$8 sm:$0xf0]
  %vm640 = vcmask 1047556
  %v641 = vsel %vm640, %v639, %v637
  %642 = vrot.lane.b32.xlu0 %v641, 16
  %v643 = vpop.permute.xlu0 %642
  %vm644 = vcmask 261248
  %s645 = scalar_lea.vmem %s1, 16
  %646 = vst.msk [vmem:[%s645] sm:$0xff] %vm644, %v643
  %s647 = scalar_lea.vmem %s0, 385
  %v648 = vld [vmem:[%s647] ss:$8 sm:$0xf]
  %s649 = scalar_lea.vmem %s0, 385
  %v650 = vld [vmem:[%s649] ss:$8 sm:$0xf0]
  %vm651 = vcmask 1047556
  %v652 = vsel %vm651, %v650, %v648
  %653 = vrot.lane.b32.xlu0 %v652, 16
  %v654 = vpop.permute.xlu0 %653
  %vm655 = vcmask 261248
  %s656 = scalar_lea.vmem %s1, 48
  %657 = vst.msk [vmem:[%s656] sm:$0xff] %vm655, %v654
  %s658 = scalar_lea.vmem %s0, 193
  %v659 = vld [vmem:[%s658] ss:$8 sm:$0xf]
  %s660 = scalar_lea.vmem %s0, 193
  %v661 = vld [vmem:[%s660] ss:$8 sm:$0xf0]
  %vm662 = vcmask 1047556
  %v663 = vsel %vm662, %v661, %v659
  %664 = vrot.lane.b32.xlu0 %v663, 16
  %v665 = vpop.permute.xlu0 %664
  %vm666 = vcmask 261248
  %s667 = scalar_lea.vmem %s1, 24
  %668 = vst.msk [vmem:[%s667] sm:$0xff] %vm666, %v665
  %s669 = scalar_lea.vmem %s0, 449
  %v670 = vld [vmem:[%s669] ss:$8 sm:$0xf]
  %s671 = scalar_lea.vmem %s0, 449
  %v672 = vld [vmem:[%s671] ss:$8 sm:$0xf0]
  %vm673 = vcmask 1047556
  %v674 = vsel %vm673, %v672, %v670
  %675 = vrot.lane.b32.xlu0 %v674, 16
  %v676 = vpop.permute.xlu0 %675
  %vm677 = vcmask 261248
  %s678 = scalar_lea.vmem %s1, 56
  %679 = vst.msk [vmem:[%s678] sm:$0xff] %vm677, %v676

// kernel: dice_loss.1
$region0: #{dice_loss.1}
  #allocation0 [shape = 'u32[]', space=smem, size = 0x4, offset = 0x4, fixed_abs, tag = 'smem constant byte address 0x4 - core index']
  #allocation1 [shape = 'u32[144,128]{1,0:T(1,128)}', space=vmem, size = 0x12000, scoped, tag = 'internal scratch']
  %s0 = inlined_call_operand.vmem [shape: f32[4,16,128], index: 0, kind: input, shape index: {}]
  %s1 = inlined_call_operand.vmem [shape: f32[4,16,128], index: 1, kind: input, shape index: {}]
  %s2 = inlined_call_operand.vmem [shape: f32[4,8,128], index: 2, kind: output, shape index: {0}]
  %s3 = inlined_call_operand.vmem [shape: f32[4,8,128], index: 3, kind: output, shape index: {1}]
  %s4 = inlined_call_operand.vmem [shape: f32[4,8,128], index: 4, kind: output, shape index: {2}]
  %5 = xla_tuple %s2, %s3, %s4
  %s6 = sld [smem:[#allocation0]]
  $region61: #{dice_loss.1} parent=0
    _
  %s8 = ssub.s32 1, %s6
  %s9 = scalar_select 0, %s8, %s6
  loop: start=0, step=1, limit=6
  $region2: #{dice_loss.1} parent=0 // loop_pre_header
    _
  $region3: #{dice_loss.1} parent=0 // loop_header
    %s11 = sphi 0, %s15
    %p12 = scmp.ge.s32.totalorder %s11, 6
    %s18 = sphi 0, %s30
    %s19 = sphi 0, %s26
    %s20 = sphi 0, %s18
    %s21 = sphi 0, %s19
    %s22 = sphi 0, %s20
    %s23 = sphi 0, %s21
    %s35 = sphi 0, %s37
    %s38 = sphi 0, %s35
    %s39 = sphi 0, %s38
    %s55 = sphi 0, %s39
    %s63 = sphi 0, %s65
    %s66 = sphi 0, %s63
    %s67 = sphi 0, %s66
    %s83 = sphi 0, %s67
    %s89 = sphi 0, %s91
    %s92 = sphi 0, %s89
    %s93 = sphi 0, %s92
    %s109 = sphi 0, %s93
    %s115 = sphi 0, %s117
    %s118 = sphi 0, %s115
    %s119 = sphi 0, %s118
    %s135 = sphi 0, %s119
    %s141 = sphi 0, %s143
    %s144 = sphi 0, %s141
    %s145 = sphi 0, %s144
    %s161 = sphi 0, %s145
  $region4: #{dice_loss.1} parent=0 // loop_header_branch
    %14 = sbr.rel (%p12) target = $region8
  $region5: #{dice_loss.1} parent=0 // loop_body
    %s16 = ssub.s32 %s11, 1
    %s17 = ssub.s32 %s11, 2
    %s24 = sadd.s32 1, %s19
    %p25 = scmp.ge.s32.totalorder %s24, 1
    %s26 = scalar_select %p25, 0, %s24
    %s27 = sadd.s32 1, %s18
    %s28 = scalar_select %p25, %s27, %s18
    %p29 = scmp.ge.s32.totalorder %s28, 4
    %s30 = scalar_select %p29, 0, %s28
    %s31 = ssub.s32 %s18, %s30
    %s32 = ssub.s32 %s19, %s26
    %s33 = sor.u32 %s31, %s32
    %p34 = scmp.eq.s32.totalorder %s33, 0
    %s36 = sadd.s32 %s35, 1
    %s37 = scalar_select %p34, %s35, %s36
    %p40 = pneg %p34
    %p41 = scmp.eq.s32.totalorder %s11, 3
    %p42 = por %p40, %p41
    %p43 = scmp.ne.s32.totalorder %s35, %s38
    %p44 = scmp.eq.s32.totalorder %s11, 0
    %p45 = por %p43, %p44
    %p46 = scmp.ne.s32.totalorder %s35, %s38
    %p47 = scmp.eq.s32.totalorder %s16, 3
    %p48 = por %p46, %p47
    %p49 = scmp.ne.s32.totalorder %s38, %s39
    %p50 = scmp.eq.s32.totalorder %s16, 0
    %p51 = por %p49, %p50
    %p52 = scmp.ne.s32.totalorder %s38, %s39
    %p53 = scmp.eq.s32.totalorder %s17, 3
    %p54 = por %p52, %p53
    %p56 = scmp.ne.s32.totalorder %s39, %s55
    %p57 = scmp.eq.s32.totalorder %s17, 0
    %p58 = por %p56, %p57
    %s59 = ssub.s32 %s18, %s30
    %s60 = ssub.s32 %s19, %s26
    %s61 = sor.u32 %s59, %s60
    %p62 = scmp.eq.s32.totalorder %s61, 0
    %s64 = sadd.s32 %s63, 1
    %s65 = scalar_select %p62, %s63, %s64
    %p68 = pneg %p62
    %p69 = scmp.eq.s32.totalorder %s11, 3
    %p70 = por %p68, %p69
    %p71 = scmp.ne.s32.totalorder %s63, %s66
    %p72 = scmp.eq.s32.totalorder %s11, 0
    %p73 = por %p71, %p72
    %p74 = scmp.ne.s32.totalorder %s63, %s66
    %p75 = scmp.eq.s32.totalorder %s16, 3
    %p76 = por %p74, %p75
    %p77 = scmp.ne.s32.totalorder %s66, %s67
    %p78 = scmp.eq.s32.totalorder %s16, 0
    %p79 = por %p77, %p78
    %p80 = scmp.ne.s32.totalorder %s66, %s67
    %p81 = scmp.eq.s32.totalorder %s17, 3
    %p82 = por %p80, %p81
    %p84 = scmp.ne.s32.totalorder %s67, %s83
    %p85 = scmp.eq.s32.totalorder %s17, 0
    %p86 = por %p84, %p85
    %s87 = ssub.s32 %s18, %s30
    %p88 = scmp.eq.s32.totalorder %s87, 0
    %s90 = sadd.s32 %s89, 1
    %s91 = scalar_select %p88, %s89, %s90
    %p94 = pneg %p88
    %p95 = scmp.eq.s32.totalorder %s11, 3
    %p96 = por %p94, %p95
    %p97 = scmp.ne.s32.totalorder %s89, %s92
    %p98 = scmp.eq.s32.totalorder %s11, 0
    %p99 = por %p97, %p98
    %p100 = scmp.ne.s32.totalorder %s89, %s92
    %p101 = scmp.eq.s32.totalorder %s16, 3
    %p102 = por %p100, %p101
    %p103 = scmp.ne.s32.totalorder %s92, %s93
    %p104 = scmp.eq.s32.totalorder %s16, 0
    %p105 = por %p103, %p104
    %p106 = scmp.ne.s32.totalorder %s92, %s93
    %p107 = scmp.eq.s32.totalorder %s17, 3
    %p108 = por %p106, %p107
    %p110 = scmp.ne.s32.totalorder %s93, %s109
    %p111 = scmp.eq.s32.totalorder %s17, 0
    %p112 = por %p110, %p111
    %s113 = ssub.s32 %s18, %s30
    %p114 = scmp.eq.s32.totalorder %s113, 0
    %s116 = sadd.s32 %s115, 1
    %s117 = scalar_select %p114, %s115, %s116
    %p120 = pneg %p114
    %p121 = scmp.eq.s32.totalorder %s11, 3
    %p122 = por %p120, %p121
    %p123 = scmp.ne.s32.totalorder %s115, %s118
    %p124 = scmp.eq.s32.totalorder %s11, 0
    %p125 = por %p123, %p124
    %p126 = scmp.ne.s32.totalorder %s115, %s118
    %p127 = scmp.eq.s32.totalorder %s16, 3
    %p128 = por %p126, %p127
    %p129 = scmp.ne.s32.totalorder %s118, %s119
    %p130 = scmp.eq.s32.totalorder %s16, 0
    %p131 = por %p129, %p130
    %p132 = scmp.ne.s32.totalorder %s118, %s119
    %p133 = scmp.eq.s32.totalorder %s17, 3
    %p134 = por %p132, %p133
    %p136 = scmp.ne.s32.totalorder %s119, %s135
    %p137 = scmp.eq.s32.totalorder %s17, 0
    %p138 = por %p136, %p137
    %s139 = ssub.s32 %s18, %s30
    %p140 = scmp.eq.s32.totalorder %s139, 0
    %s142 = sadd.s32 %s141, 1
    %s143 = scalar_select %p140, %s141, %s142
    %p146 = pneg %p140
    %p147 = scmp.eq.s32.totalorder %s11, 3
    %p148 = por %p146, %p147
    %p149 = scmp.ne.s32.totalorder %s141, %s144
    %p150 = scmp.eq.s32.totalorder %s11, 0
    %p151 = por %p149, %p150
    %p152 = scmp.ne.s32.totalorder %s141, %s144
    %p153 = scmp.eq.s32.totalorder %s16, 3
    %p154 = por %p152, %p153
    %p155 = scmp.ne.s32.totalorder %s144, %s145
    %p156 = scmp.eq.s32.totalorder %s16, 0
    %p157 = por %p155, %p156
    %p158 = scmp.ne.s32.totalorder %s144, %s145
    %p159 = scmp.eq.s32.totalorder %s17, 3
    %p160 = por %p158, %p159
    %p162 = scmp.ne.s32.totalorder %s145, %s161
    %p163 = scmp.eq.s32.totalorder %s17, 0
    %p164 = por %p162, %p163
    %p165 = scmp.le.s32.totalorder 1, %s11
    %p166 = scmp.lt.s32.totalorder %s11, 5
    %p167 = pnand %p165, %p166
    %p168 = pneg %p167
    // Predicated region
    $region9: #{dice_loss.1} parent=5 // pred_check
      _
    $region10: #{dice_loss.1} parent=5 // pred_check_branch
      %170 = sbr.rel (%p167) target = $region12
    $region11: #{dice_loss.1} parent=5 // pred_region
      %s171 = ssub.s32 %s11, 1
    $region12: #{dice_loss.1} parent=5 // pred_fallthru
      _
    %p172 = scmp.lt.s32.totalorder %s11, 4
    // Predicated region
    $region13: #{dice_loss.1} parent=5 // pred_check
      %p173 = pneg %p172
    $region14: #{dice_loss.1} parent=5 // pred_check_branch
      %175 = sbr.rel (%p173) target = $region16
    $region15: #{dice_loss.1} parent=5 // pred_region
      // Predicated region
      $region17: #{dice_loss.1} parent=15 // pred_check
        %p176 = pneg %p45
      $region18: #{dice_loss.1} parent=15 // pred_check_branch
        %178 = sbr.rel (%p176) target = $region20
      $region19: #{dice_loss.1} parent=15 // pred_region
        %s179 = smul.u32 2, %s19
        %p180 = scmp.lt.s32.totalorder %s18, 3
        %s181 = scalar_select %p180, %s18, 3
        %p182 = scmp.lt.s32.totalorder %s179, 1
        %s183 = scalar_select %p182, %s179, 1
        %s184 = smul.addr %s181, 2
        %s185 = sadd.s32 %s183, %s184
        %s186 = smul.addr %s185, 8
        %s187 = scalar_lea.vmem %s0, %s186
        %s188 = smul.u32 2, %s19
      $region20: #{dice_loss.1} parent=15 // pred_fallthru
        _
      // Predicated region
      $region21: #{dice_loss.1} parent=15 // pred_check
        %p189 = pneg %p73
      $region22: #{dice_loss.1} parent=15 // pred_check_branch
        %191 = sbr.rel (%p189) target = $region24
      $region23: #{dice_loss.1} parent=15 // pred_region
        %s192 = smul.u32 2, %s19
        %p193 = scmp.lt.s32.totalorder %s18, 3
        %s194 = scalar_select %p193, %s18, 3
        %p195 = scmp.lt.s32.totalorder %s192, 1
        %s196 = scalar_select %p195, %s192, 1
        %s197 = smul.addr %s194, 2
        %s198 = sadd.s32 %s196, %s197
        %s199 = smul.addr %s198, 8
        %s200 = scalar_lea.vmem %s1, %s199
        %s201 = smul.u32 2, %s19
      $region24: #{dice_loss.1} parent=15 // pred_fallthru
        _
    $region16: #{dice_loss.1} parent=5 // pred_fallthru
      _
    %p202 = scmp.le.s32.totalorder 1, %s11
    %p203 = scmp.lt.s32.totalorder %s11, 5
    %p204 = pnand %p202, %p203
    %p205 = pneg %p204
    // Predicated region
    $region25: #{dice_loss.1} parent=5 // pred_check
      _
    $region26: #{dice_loss.1} parent=5 // pred_check_branch
      %207 = sbr.rel (%p204) target = $region28
    $region27: #{dice_loss.1} parent=5 // pred_region
      %s208 = ssub.s32 %s11, 1
      %s209 = smul.u32 2, %s21
      %p210 = scmp.lt.s32.totalorder %s20, 3
      %s211 = scalar_select %p210, %s20, 3
      %p212 = scmp.lt.s32.totalorder %s209, 1
      %s213 = scalar_select %p212, %s209, 1
      %s214 = smul.addr %s211, 2
      %s215 = sadd.s32 %s213, %s214
      %s216 = smul.addr %s215, 8
      %s217 = scalar_lea.vmem %s0, %s216
      %p218 = pneg %p51
      %p219 = pneg %p48
      %s220 = smul.u32 2, %s21
      %p221 = scmp.lt.s32.totalorder %s20, 3
      %s222 = scalar_select %p221, %s20, 3
      %p223 = scmp.lt.s32.totalorder %s220, 1
      %s224 = scalar_select %p223, %s220, 1
      %s225 = smul.addr %s222, 2
      %s226 = sadd.s32 %s224, %s225
      %s227 = smul.addr %s226, 8
      %s228 = scalar_lea.vmem %s1, %s227
      %p229 = pneg %p79
      %p230 = pneg %p76
      %p231 = pneg %p105
      %p232 = pneg %p102
      %p233 = scmp.lt.s32.totalorder %s20, 3
      %s234 = scalar_select %p233, %s20, 3
      %s235 = smul.addr %s234, 8
      %s236 = scalar_lea.vmem %s2, %s235
      %p237 = pneg %p131
      %p238 = pneg %p128
      %p239 = scmp.lt.s32.totalorder %s20, 3
      %s240 = scalar_select %p239, %s20, 3
      %s241 = smul.addr %s240, 8
      %s242 = scalar_lea.vmem %s3, %s241
      %p243 = pneg %p157
      %p244 = pneg %p154
      %p245 = scmp.lt.s32.totalorder %s20, 3
      %s246 = scalar_select %p245, %s20, 3
      %s247 = smul.addr %s246, 8
      %s248 = scalar_lea.vmem %s4, %s247
      %s249 = smul.u32 2, %s21
      %p250 = scmp.lt.s32.totalorder %s20, 3
      %s251 = scalar_select %p250, %s20, 3
      %p252 = scmp.lt.s32.totalorder %s249, 1
      %s253 = scalar_select %p252, %s249, 1
      %s254 = smul.addr %s251, 2
      %s255 = sadd.s32 %s253, %s254
      %s256 = smul.addr %s255, 8
      %s257 = scalar_lea.vmem %s0, %s256
      %s258 = smul.u32 2, %s21
      %s259 = smul.u32 2, %s21
      %p260 = scmp.lt.s32.totalorder %s20, 3
      %s261 = scalar_select %p260, %s20, 3
      %p262 = scmp.lt.s32.totalorder %s259, 1
      %s263 = scalar_select %p262, %s259, 1
      %s264 = smul.addr %s261, 2
      %s265 = sadd.s32 %s263, %s264
      %s266 = smul.addr %s265, 8
      %s267 = scalar_lea.vmem %s1, %s266
      %s268 = smul.u32 2, %s21
      %p269 = scmp.lt.s32.totalorder %s20, 3
      %s270 = scalar_select %p269, %s20, 3
      %s271 = smul.addr %s270, 8
      %s272 = scalar_lea.vmem %s2, %s271
      %p273 = scmp.lt.s32.totalorder %s20, 3
      %s274 = scalar_select %p273, %s20, 3
      %s275 = smul.addr %s274, 8
      %s276 = scalar_lea.vmem %s3, %s275
      %p277 = scmp.lt.s32.totalorder %s20, 3
      %s278 = scalar_select %p277, %s20, 3
      %s279 = smul.addr %s278, 8
      %s280 = scalar_lea.vmem %s4, %s279
      %p281 = scmp.eq.s32.totalorder %s21, 0
      // Predicated region
      $region29: #{dice_loss.1} parent=27 // pred_check
        %p282 = pneg %p281
      $region30: #{dice_loss.1} parent=27 // pred_check_branch
        %284 = sbr.rel (%p282) target = $region32
      $region31: #{dice_loss.1} parent=27 // pred_region
        %285 = vst [vmem:[%s272] sm:$0xff] 0.0
        %286 = vst [vmem:[%s276] sm:$0xff] 0.0
        %287 = vst [vmem:[%s280] sm:$0xff] 0.0
      $region32: #{dice_loss.1} parent=27 // pred_fallthru
        _
      %v288 = vld [vmem:[%s257] sm:$0xff]
      %v289 = vld [vmem:[%s257 + $0x8] sm:$0xff]
      %v290 = vld [vmem:[%s267] sm:$0xff]
      %v291 = vld [vmem:[%s267 + $0x8] sm:$0xff]
      %v292 = vmul.f32 %v288, 0.5
      %v293 = vmul.f32 %v289, 0.5
      %v294 = vtanh.pop %v292
      %v295 = vtanh.pop %v293
      %v296 = vadd.f32 %v294, 1.0
      %v297 = vadd.f32 %v295, 1.0
      %v298 = vmul.f32 %v296, 0.5
      %v299 = vmul.f32 %v297, 0.5
      %v300 = vmul.f32 %v298, %v290
      %v301 = vmul.f32 %v299, %v291
      %v302 = vadd.f32 %v300, %v301
      %v303 = vadd.f32 %v302, 0.0
      %v304 = vadd.f32 %v298, %v299
      %v305 = vadd.f32 %v304, 0.0
      %v306 = vadd.f32 %v290, %v291
      %v307 = vadd.f32 %v306, 0.0
      %v308 = vld [vmem:[%s272] sm:$0xff]
      %v309 = vadd.f32 %v308, %v303
      %310 = vst [vmem:[%s272] sm:$0xff] %v309
      %v311 = vld [vmem:[%s276] sm:$0xff]
      %v312 = vadd.f32 %v311, %v305
      %313 = vst [vmem:[%s276] sm:$0xff] %v312
      %v314 = vld [vmem:[%s280] sm:$0xff]
      %v315 = vadd.f32 %v314, %v307
      %316 = vst [vmem:[%s280] sm:$0xff] %v315
      %p317 = scmp.lt.s32.totalorder %s20, 3
      %s318 = scalar_select %p317, %s20, 3
      %s319 = smul.addr %s318, 8
      %s320 = scalar_lea.vmem %s2, %s319
      %p321 = scmp.lt.s32.totalorder %s20, 3
      %s322 = scalar_select %p321, %s20, 3
      %s323 = smul.addr %s322, 8
      %s324 = scalar_lea.vmem %s3, %s323
      %p325 = scmp.lt.s32.totalorder %s20, 3
      %s326 = scalar_select %p325, %s20, 3
      %s327 = smul.addr %s326, 8
      %s328 = scalar_lea.vmem %s4, %s327
      // Predicated region
      $region33: #{dice_loss.1} parent=27 // pred_check
        %p329 = pneg %p102
      $region34: #{dice_loss.1} parent=27 // pred_check_branch
        %331 = sbr.rel (%p329) target = $region36
      $region35: #{dice_loss.1} parent=27 // pred_region
        _
      $region36: #{dice_loss.1} parent=27 // pred_fallthru
        _
      // Predicated region
      $region37: #{dice_loss.1} parent=27 // pred_check
        %p332 = pneg %p128
      $region38: #{dice_loss.1} parent=27 // pred_check_branch
        %334 = sbr.rel (%p332) target = $region40
      $region39: #{dice_loss.1} parent=27 // pred_region
        _
      $region40: #{dice_loss.1} parent=27 // pred_fallthru
        _
      // Predicated region
      $region41: #{dice_loss.1} parent=27 // pred_check
        %p335 = pneg %p154
      $region42: #{dice_loss.1} parent=27 // pred_check_branch
        %337 = sbr.rel (%p335) target = $region44
      $region43: #{dice_loss.1} parent=27 // pred_region
        _
      $region44: #{dice_loss.1} parent=27 // pred_fallthru
        _
    $region28: #{dice_loss.1} parent=5 // pred_fallthru
      _
    %p338 = scmp.le.s32.totalorder 2, %s11
    // Predicated region
    $region45: #{dice_loss.1} parent=5 // pred_check
      %p339 = pneg %p338
    $region46: #{dice_loss.1} parent=5 // pred_check_branch
      %341 = sbr.rel (%p339) target = $region48
    $region47: #{dice_loss.1} parent=5 // pred_region
      %s342 = ssub.s32 %s11, 2
      // Predicated region
      $region49: #{dice_loss.1} parent=47 // pred_check
        %p343 = pneg %p108
      $region50: #{dice_loss.1} parent=47 // pred_check_branch
        %345 = sbr.rel (%p343) target = $region52
      $region51: #{dice_loss.1} parent=47 // pred_region
        %p346 = scmp.lt.s32.totalorder %s22, 3
        %s347 = scalar_select %p346, %s22, 3
        %s348 = smul.addr %s347, 8
        %s349 = scalar_lea.vmem %s2, %s348
      $region52: #{dice_loss.1} parent=47 // pred_fallthru
        _
      // Predicated region
      $region53: #{dice_loss.1} parent=47 // pred_check
        %p350 = pneg %p134
      $region54: #{dice_loss.1} parent=47 // pred_check_branch
        %352 = sbr.rel (%p350) target = $region56
      $region55: #{dice_loss.1} parent=47 // pred_region
        %p353 = scmp.lt.s32.totalorder %s22, 3
        %s354 = scalar_select %p353, %s22, 3
        %s355 = smul.addr %s354, 8
        %s356 = scalar_lea.vmem %s3, %s355
      $region56: #{dice_loss.1} parent=47 // pred_fallthru
        _
      // Predicated region
      $region57: #{dice_loss.1} parent=47 // pred_check
        %p357 = pneg %p160
      $region58: #{dice_loss.1} parent=47 // pred_check_branch
        %359 = sbr.rel (%p357) target = $region60
      $region59: #{dice_loss.1} parent=47 // pred_region
        %p360 = scmp.lt.s32.totalorder %s22, 3
        %s361 = scalar_select %p360, %s22, 3
        %s362 = smul.addr %s361, 8
        %s363 = scalar_lea.vmem %s4, %s362
      $region60: #{dice_loss.1} parent=47 // pred_fallthru
        _
    $region48: #{dice_loss.1} parent=5 // pred_fallthru
      _
  $region6: #{dice_loss.1} parent=0 // loop_footer
    %s15 = sadd.s32 1, %s11
  $region7: #{dice_loss.1} parent=0 // loop_footer_branch
    %10 = sbr.rel target = $region3
  $region8: #{dice_loss.1} parent=0 // loop_exit
    _

</llo_original>
